<compile_context>
chip_gen: v6e
topology: v6e:2x2x1
jax: 0.10.0
libtpu: 0.0.40
codegen_flags: <defaults>
</compile_context>

<pallas_src>
import functools
import math

import jax
import jax.numpy as jnp
from jax.experimental import pallas as pl
from jax.experimental.pallas import tpu as pltpu

NEG_SLOPE = 0.2


def _leaky(x):
    return jnp.where(x > 0, x, NEG_SLOPE * x)


# ---------------------------------------------------------------------------
# Kernel 1: tiled 2-D matmul (small per-level W_root projections)
# ---------------------------------------------------------------------------

def _matmul_kernel(x_ref, w_ref, o_ref):
    o_ref[...] = jnp.dot(x_ref[...], w_ref[...],
                         preferred_element_type=jnp.float32)


def pallas_linear(x2d, w, tile_m=512):
    """(M, K) @ (K, N) on the MXU, tiled over M with double-buffered pipeline."""
    M, K = x2d.shape
    N = w.shape[1]
    tm = M if M <= tile_m else tile_m          # tile_m multiple of 8, or full M
    return pl.pallas_call(
        _matmul_kernel,
        out_shape=jax.ShapeDtypeStruct((M, N), jnp.float32),
        grid=(pl.cdiv(M, tm),),
        in_specs=[pl.BlockSpec((tm, K), lambda i: (i, 0)),
                  pl.BlockSpec((K, N), lambda i: (0, 0))],
        out_specs=pl.BlockSpec((tm, N), lambda i: (i, 0)),
        compiler_params=pltpu.CompilerParams(
            dimension_semantics=("parallel",)),
    )(x2d, w)


# ---------------------------------------------------------------------------
# Kernel 2: fused TreeGCN layer (branch + loop linear + root add + bias + act)
# grid = (node,); everything is node-major.
# ---------------------------------------------------------------------------

def _layer_kernel(deg, activation, x_ref, wbr_ref, wroot_ref, wl_ref,
                  bias_ref, *rest):
    rn_refs = rest[:-1]      # pre-projected root contributions of earlier levels
    out_ref = rest[-1]

    x = x_ref[0]                                              # (B, in_f)
    # root contribution of the last tree level (tree[-1] @ W_root[depth])
    root = jnp.dot(x, wroot_ref[...], preferred_element_type=jnp.float32)
    for r in rn_refs:                                         # (B, out_f) each
        root = root + r[0]

    for d in range(deg):                                      # static unroll
        br = jnp.dot(x, wbr_ref[0, d], preferred_element_type=jnp.float32)
        br = _leaky(br)                                       # (B, in_f)
        h = jnp.dot(br, wl_ref[...], preferred_element_type=jnp.float32)
        y = h + root                                          # (B, out_f)
        if activation:
            y = _leaky(y + bias_ref[:, d, :])
        out_ref[0, d] = y


def _rn_index_map(rep, n):
    # torch: root_node.repeat(1,1,rep).view(...)  ==  row n -> source row n//rep
    return (n // rep, 0, 0)


def pallas_tree_layer(x_nm, wb_r, w_root_last, w_loop, bias,
                      rn_list, rep_list, activation):
    """One TreeGCN layer.

    x_nm        : (node, B, in_f)          node-major activations (tree[-1])
    wb_r        : (node, deg, in_f, in_f)  W_branch split per degree
    w_root_last : (in_f, out_f)            W_root for the last tree level
    w_loop      : (in_f, out_f)            collapsed W_loop1 @ W_loop2
    bias        : (1, deg, out_f)
    rn_list[i]  : (root_num_i, B, out_f)   earlier-level root projections
    returns     : (node, deg, B, out_f)
    """
    node, B, in_f = x_nm.shape
    deg = wb_r.shape[1]
    out_f = w_loop.shape[1]

    in_specs = [
        pl.BlockSpec((1, B, in_f), lambda n: (n, 0, 0)),
        pl.BlockSpec((1, deg, in_f, in_f), lambda n: (n, 0, 0, 0)),
        pl.BlockSpec((in_f, out_f), lambda n: (0, 0)),
        pl.BlockSpec((in_f, out_f), lambda n: (0, 0)),
        pl.BlockSpec((1, deg, out_f), lambda n: (0, 0, 0)),
    ]
    for rep in rep_list:
        in_specs.append(pl.BlockSpec((1, B, out_f),
                                     functools.partial(_rn_index_map, rep)))

    return pl.pallas_call(
        functools.partial(_layer_kernel, deg, activation),
        out_shape=jax.ShapeDtypeStruct((node, deg, B, out_f), jnp.float32),
        grid=(node,),
        in_specs=in_specs,
        out_specs=pl.BlockSpec((1, deg, B, out_f), lambda n: (n, 0, 0, 0)),
        compiler_params=pltpu.CompilerParams(
            dimension_semantics=("parallel",)),
    )(x_nm, wb_r, w_root_last, w_loop, bias, *rn_list)


# ---------------------------------------------------------------------------
# Parameter init (deterministic, mirrors the PyTorch module's initializers)
# ---------------------------------------------------------------------------

def init_generator_params(key, features, degrees, support):
    layer_num = len(features) - 1
    assert layer_num == len(degrees)
    params = []
    node = 1
    for depth in range(layer_num):
        in_f, out_f, deg = features[depth], features[depth + 1], degrees[depth]
        key, k_branch, k_l1, k_l2, k_bias = jax.random.split(key, 5)

        # W_root[inx]: Linear(features[inx] -> out_f, bias=False), stored (in, out)
        w_root = []
        for inx in range(depth + 1):
            key, sub = jax.random.split(key)
            s = 1.0 / math.sqrt(features[inx])
            w_root.append(jax.random.uniform(sub, (features[inx], out_f),
                                             jnp.float32, -s, s))

        # W_branch: (node, in_f, deg*in_f), xavier_uniform with relu gain
        gain = math.sqrt(2.0)
        a = gain * math.sqrt(6.0 / (in_f + deg * in_f))
        w_branch = jax.random.uniform(k_branch, (node, in_f, deg * in_f),
                                      jnp.float32, -a, a)
        # Degree-split view used by the fused kernel: (node, deg, in_f, in_f)
        wb_r = w_branch.reshape(node, in_f, deg, in_f).transpose(0, 2, 1, 3)

        # W_loop: Linear(in_f -> in_f*support) ; Linear(in_f*support -> out_f)
        s1 = 1.0 / math.sqrt(in_f)
        w_loop1 = jax.random.uniform(k_l1, (in_f, in_f * support),
                                     jnp.float32, -s1, s1)
        s2 = 1.0 / math.sqrt(in_f * support)
        w_loop2 = jax.random.uniform(k_l2, (in_f * support, out_f),
                                     jnp.float32, -s2, s2)
        w_loop = w_loop1 @ w_loop2           # exact: no nonlinearity in between

        # bias: (1, deg, out_f), uniform(-1/sqrt(out_f), 1/sqrt(out_f))
        sb = 1.0 / math.sqrt(out_f)
        bias = jax.random.uniform(k_bias, (1, deg, out_f), jnp.float32, -sb, sb)

        params.append(dict(w_root=w_root, w_branch=w_branch, wb_r=wb_r,
                           w_loop1=w_loop1, w_loop2=w_loop2, w_loop=w_loop,
                           bias=bias, node=node, degree=deg,
                           in_f=in_f, out_f=out_f,
                           activation=(depth != layer_num - 1)))
        node *= deg
    return params


# ---------------------------------------------------------------------------
# Pallas forward (node-major internally, returns (B, N, F))
# ---------------------------------------------------------------------------

def pallas_generator_forward(z, params):
    B = z.shape[0]
    tree = [z[None, :, :]]                       # (1, B, z_size), node-major
    for p in params:
        node, deg, out_f = p['node'], p['degree'], p['out_f']
        depth = len(p['w_root']) - 1

        # Pre-project the earlier tree levels with W_root (tiny matmuls); their
        # repetition to `node` rows is expressed in the fused kernel index_map.
        rn_list, rep_list = [], []
        for inx in range(depth):
            rn_nodes, _, feat = tree[inx].shape
            x2d = tree[inx].reshape(rn_nodes * B, feat)
            rn = pallas_linear(x2d, p['w_root'][inx]).reshape(rn_nodes, B, out_f)
            rn_list.append(rn)
            rep_list.append(node // rn_nodes)

        out4 = pallas_tree_layer(tree[-1], p['wb_r'], p['w_root'][depth],
                                 p['w_loop'], p['bias'], rn_list, rep_list,
                                 p['activation'])
        tree.append(out4.reshape(node * deg, B, out_f))

    return jnp.transpose(tree[-1], (1, 0, 2))    # (B, N, F) like torch


# ---------------------------------------------------------------------------
# Pure-JAX reference (batch-major, literal transcription of the torch forward)
# ---------------------------------------------------------------------------

def reference_forward(z, params):
    tree = [z[:, None, :]]
    B = z.shape[0]
    for p in params:
        node, deg, in_f, out_f = p['node'], p['degree'], p['in_f'], p['out_f']
        depth = len(p['w_root']) - 1
        root = jnp.zeros((B, node, out_f), jnp.float32)
        for inx in range(depth + 1):
            rn_num = tree[inx].shape[1]
            rep = node // rn_num
            rn = tree[inx] @ p['w_root'][inx]
            root = root + jnp.repeat(rn, rep, axis=1)
        x = tree[-1]
        br = _leaky(jnp.einsum('bnf,nfg->bng', x, p['w_branch']))
        br = br.reshape(B, node * deg, in_f)
        h = (br @ p['w_loop1']) @ p['w_loop2']
        y = jnp.repeat(root, deg, axis=1) + h
        if p['activation']:
            y = _leaky(y + jnp.tile(p['bias'], (1, node, 1)))
        tree.append(y)
    return tree[-1]


# ---------------------------------------------------------------------------

if __name__ == "__main__":
    # Small config: len(features) == len(degrees) + 1; z_size == features[0].
    features = [32, 16, 16, 8]
    degrees = [2, 2, 4]
    support = 4
    z_size = features[0]
    B = 2

    key = jax.random.PRNGKey(0)
    kz, kp = jax.random.split(key)
    z = jax.random.normal(kz, (B, z_size), jnp.float32)
    params = init_generator_params(kp, features, degrees, support)

    out = pallas_generator_forward(z, params)
    out = jax.block_until_ready(out)

    ref = reference_forward(z, params)

    total_nodes = 1
    for d in degrees:
        total_nodes *= d
    assert out.shape == (B, total_nodes, features[-1]), out.shape
    assert jnp.allclose(out, ref, atol=1e-4, rtol=1e-4), "mismatch vs JAX reference"
    print("KERNEL_OK")
</pallas_src>

<mosaic_0001>
module attributes {stable_mosaic.version = 11 : i64} {
  func.func @_layer_kernel(%arg0: i32, %arg1: memref<1x2x32xf32, #tpu.memory_space<vmem>>, %arg2: memref<1x2x32x32xf32, #tpu.memory_space<vmem>>, %arg3: memref<32x16xf32, #tpu.memory_space<vmem>>, %arg4: memref<32x16xf32, #tpu.memory_space<vmem>>, %arg5: memref<1x2x16xf32, #tpu.memory_space<vmem>>, %arg6: memref<1x2x2x16xf32, #tpu.memory_space<vmem>>) attributes {dimension_semantics = [#tpu.dimension_semantics<parallel>], iteration_bounds = array<i64: 1>, scalar_prefetch = 0 : i64, scratch_operands = 0 : i64, tpu.core_type = #tpu.core_type<tc>, window_params = [{transform_indices = @transform_0, window_bounds = array<i64: 1, 2, 32>}, {transform_indices = @transform_1, window_bounds = array<i64: 1, 2, 32, 32>}, {pipeline_mode = #tpu.pipeline_mode<synchronous>, transform_indices = @transform_2, window_bounds = array<i64: 32, 16>}, {pipeline_mode = #tpu.pipeline_mode<synchronous>, transform_indices = @transform_3, window_bounds = array<i64: 32, 16>}, {pipeline_mode = #tpu.pipeline_mode<synchronous>, transform_indices = @transform_4, window_bounds = array<i64: 1, 2, 16>}, {transform_indices = @transform_5, window_bounds = array<i64: 1, 2, 2, 16>}]} {
    %c0 = arith.constant 0 : index
    %c0_0 = arith.constant 0 : index
    %c0_1 = arith.constant 0 : index
    %0 = vector.load %arg1[%c0, %c0_0, %c0_1] : memref<1x2x32xf32, #tpu.memory_space<vmem>>, vector<1x2x32xf32>
    %1 = vector.shape_cast %0 : vector<1x2x32xf32> to vector<2x32xf32>
    %c0_2 = arith.constant 0 : index
    %c0_3 = arith.constant 0 : index
    %2 = vector.load %arg3[%c0_2, %c0_3] : memref<32x16xf32, #tpu.memory_space<vmem>>, vector<32x16xf32>
    %cst = arith.constant dense<0.000000e+00> : vector<2x16xf32>
    %3 = tpu.matmul %1, %2, %cst {dimension_numbers = #tpu.dot_dimension_numbers<[1], [0], [0], [1], [0, 0, 1, 1], [], []>} : vector<2x32xf32>, vector<32x16xf32>, vector<2x16xf32> -> vector<2x16xf32>
    %c0_4 = arith.constant 0 : index
    %c0_5 = arith.constant 0 : index
    %c0_6 = arith.constant 0 : index
    %c0_7 = arith.constant 0 : index
    %4 = vector.load %arg2[%c0_4, %c0_5, %c0_6, %c0_7] : memref<1x2x32x32xf32, #tpu.memory_space<vmem>>, vector<1x1x32x32xf32>
    %5 = vector.shape_cast %4 : vector<1x1x32x32xf32> to vector<32x32xf32>
    %cst_8 = arith.constant dense<0.000000e+00> : vector<2x32xf32>
    %6 = tpu.matmul %1, %5, %cst_8 {dimension_numbers = #tpu.dot_dimension_numbers<[1], [0], [0], [1], [0, 0, 1, 1], [], []>} : vector<2x32xf32>, vector<32x32xf32>, vector<2x32xf32> -> vector<2x32xf32>
    %cst_9 = arith.constant 0.000000e+00 : f32
    %7 = vector.broadcast %cst_9 : f32 to vector<2x32xf32>
    %8 = arith.cmpf ogt, %6, %7 : vector<2x32xf32>
    %cst_10 = arith.constant 2.000000e-01 : f32
    %9 = vector.broadcast %cst_10 : f32 to vector<2x32xf32>
    %10 = arith.mulf %9, %6 : vector<2x32xf32>
    %11 = arith.select %8, %6, %10 : vector<2x32xi1>, vector<2x32xf32>
    %c0_11 = arith.constant 0 : index
    %c0_12 = arith.constant 0 : index
    %12 = vector.load %arg4[%c0_11, %c0_12] : memref<32x16xf32, #tpu.memory_space<vmem>>, vector<32x16xf32>
    %cst_13 = arith.constant dense<0.000000e+00> : vector<2x16xf32>
    %13 = tpu.matmul %11, %12, %cst_13 {dimension_numbers = #tpu.dot_dimension_numbers<[1], [0], [0], [1], [0, 0, 1, 1], [], []>} : vector<2x32xf32>, vector<32x16xf32>, vector<2x16xf32> -> vector<2x16xf32>
    %14 = arith.addf %13, %3 : vector<2x16xf32>
    %c0_14 = arith.constant 0 : index
    %c0_15 = arith.constant 0 : index
    %c0_16 = arith.constant 0 : index
    %15 = vector.load %arg5[%c0_14, %c0_15, %c0_16] : memref<1x2x16xf32, #tpu.memory_space<vmem>>, vector<1x1x16xf32>
    %16 = vector.shape_cast %15 : vector<1x1x16xf32> to vector<1x16xf32>
    %17 = vector.broadcast %16 : vector<1x16xf32> to vector<2x16xf32>
    %18 = arith.addf %14, %17 : vector<2x16xf32>
    %cst_17 = arith.constant 0.000000e+00 : f32
    %19 = vector.broadcast %cst_17 : f32 to vector<2x16xf32>
    %20 = arith.cmpf ogt, %18, %19 : vector<2x16xf32>
    %cst_18 = arith.constant 2.000000e-01 : f32
    %21 = vector.broadcast %cst_18 : f32 to vector<2x16xf32>
    %22 = arith.mulf %21, %18 : vector<2x16xf32>
    %23 = arith.select %20, %18, %22 : vector<2x16xi1>, vector<2x16xf32>
    %c0_19 = arith.constant 0 : index
    %c0_20 = arith.constant 0 : index
    %c0_21 = arith.constant 0 : index
    %c0_22 = arith.constant 0 : index
    %24 = vector.load %arg6[%c0_19, %c0_20, %c0_21, %c0_22] : memref<1x2x2x16xf32, #tpu.memory_space<vmem>>, vector<1x1x2x16xf32>
    %25 = vector.shape_cast %24 : vector<1x1x2x16xf32> to vector<2x16xf32>
    %26 = vector.shape_cast %23 : vector<2x16xf32> to vector<1x1x2x16xf32>
    tpu.vector_store %arg6[%c0_19, %c0_20, %c0_21, %c0_22], %26 {strides = array<i32>} : memref<1x2x2x16xf32, #tpu.memory_space<vmem>>, vector<1x1x2x16xf32>,
    %c0_23 = arith.constant 0 : index
    %c1 = arith.constant 1 : index
    %c0_24 = arith.constant 0 : index
    %c0_25 = arith.constant 0 : index
    %27 = vector.load %arg2[%c0_23, %c1, %c0_24, %c0_25] : memref<1x2x32x32xf32, #tpu.memory_space<vmem>>, vector<1x1x32x32xf32>
    %28 = vector.shape_cast %27 : vector<1x1x32x32xf32> to vector<32x32xf32>
    %cst_26 = arith.constant dense<0.000000e+00> : vector<2x32xf32>
    %29 = tpu.matmul %1, %28, %cst_26 {dimension_numbers = #tpu.dot_dimension_numbers<[1], [0], [0], [1], [0, 0, 1, 1], [], []>} : vector<2x32xf32>, vector<32x32xf32>, vector<2x32xf32> -> vector<2x32xf32>
    %cst_27 = arith.constant 0.000000e+00 : f32
    %30 = vector.broadcast %cst_27 : f32 to vector<2x32xf32>
    %31 = arith.cmpf ogt, %29, %30 : vector<2x32xf32>
    %cst_28 = arith.constant 2.000000e-01 : f32
    %32 = vector.broadcast %cst_28 : f32 to vector<2x32xf32>
    %33 = arith.mulf %32, %29 : vector<2x32xf32>
    %34 = arith.select %31, %29, %33 : vector<2x32xi1>, vector<2x32xf32>
    %c0_29 = arith.constant 0 : index
    %c0_30 = arith.constant 0 : index
    %35 = vector.load %arg4[%c0_29, %c0_30] : memref<32x16xf32, #tpu.memory_space<vmem>>, vector<32x16xf32>
    %cst_31 = arith.constant dense<0.000000e+00> : vector<2x16xf32>
    %36 = tpu.matmul %34, %35, %cst_31 {dimension_numbers = #tpu.dot_dimension_numbers<[1], [0], [0], [1], [0, 0, 1, 1], [], []>} : vector<2x32xf32>, vector<32x16xf32>, vector<2x16xf32> -> vector<2x16xf32>
    %37 = arith.addf %36, %3 : vector<2x16xf32>
    %c0_32 = arith.constant 0 : index
    %c1_33 = arith.constant 1 : index
    %c0_34 = arith.constant 0 : index
    %38 = vector.load %arg5[%c0_32, %c1_33, %c0_34] : memref<1x2x16xf32, #tpu.memory_space<vmem>>, vector<1x1x16xf32>
    %39 = vector.shape_cast %38 : vector<1x1x16xf32> to vector<1x16xf32>
    %40 = vector.broadcast %39 : vector<1x16xf32> to vector<2x16xf32>
    %41 = arith.addf %37, %40 : vector<2x16xf32>
    %cst_35 = arith.constant 0.000000e+00 : f32
    %42 = vector.broadcast %cst_35 : f32 to vector<2x16xf32>
    %43 = arith.cmpf ogt, %41, %42 : vector<2x16xf32>
    %cst_36 = arith.constant 2.000000e-01 : f32
    %44 = vector.broadcast %cst_36 : f32 to vector<2x16xf32>
    %45 = arith.mulf %44, %41 : vector<2x16xf32>
    %46 = arith.select %43, %41, %45 : vector<2x16xi1>, vector<2x16xf32>
    %c0_37 = arith.constant 0 : index
    %c1_38 = arith.constant 1 : index
    %c0_39 = arith.constant 0 : index
    %c0_40 = arith.constant 0 : index
    %47 = vector.load %arg6[%c0_37, %c1_38, %c0_39, %c0_40] : memref<1x2x2x16xf32, #tpu.memory_space<vmem>>, vector<1x1x2x16xf32>
    %48 = vector.shape_cast %47 : vector<1x1x2x16xf32> to vector<2x16xf32>
    %49 = vector.shape_cast %46 : vector<2x16xf32> to vector<1x1x2x16xf32>
    tpu.vector_store %arg6[%c0_37, %c1_38, %c0_39, %c0_40], %49 {strides = array<i32>} : memref<1x2x2x16xf32, #tpu.memory_space<vmem>>, vector<1x1x2x16xf32>,
    return
  }
  func.func @transform_0(%arg0: i32) -> (i32, i32, i32) {
    %c0_i32 = arith.constant 0 : i32
    %c0_i32_0 = arith.constant 0 : i32
    %c0_i32_1 = arith.constant 0 : i32
    return %arg0, %c0_i32, %c0_i32_0 : i32, i32, i32
  }
  func.func @transform_1(%arg0: i32) -> (i32, i32, i32, i32) {
    %c0_i32 = arith.constant 0 : i32
    %c0_i32_0 = arith.constant 0 : i32
    %c0_i32_1 = arith.constant 0 : i32
    %c0_i32_2 = arith.constant 0 : i32
    return %arg0, %c0_i32, %c0_i32_0, %c0_i32_1 : i32, i32, i32, i32
  }
  func.func @transform_2(%arg0: i32) -> (i32, i32) {
    %c0_i32 = arith.constant 0 : i32
    %c0_i32_0 = arith.constant 0 : i32
    %c0_i32_1 = arith.constant 0 : i32
    return %c0_i32, %c0_i32_0 : i32, i32
  }
  func.func @transform_3(%arg0: i32) -> (i32, i32) {
    %c0_i32 = arith.constant 0 : i32
    %c0_i32_0 = arith.constant 0 : i32
    %c0_i32_1 = arith.constant 0 : i32
    return %c0_i32, %c0_i32_0 : i32, i32
  }
  func.func @transform_4(%arg0: i32) -> (i32, i32, i32) {
    %c0_i32 = arith.constant 0 : i32
    %c0_i32_0 = arith.constant 0 : i32
    %c0_i32_1 = arith.constant 0 : i32
    %c0_i32_2 = arith.constant 0 : i32
    return %c0_i32, %c0_i32_0, %c0_i32_1 : i32, i32, i32
  }
  func.func @transform_5(%arg0: i32) -> (i32, i32, i32, i32) {
    %c0_i32 = arith.constant 0 : i32
    %c0_i32_0 = arith.constant 0 : i32
    %c0_i32_1 = arith.constant 0 : i32
    %c0_i32_2 = arith.constant 0 : i32
    return %arg0, %c0_i32, %c0_i32_0, %c0_i32_1 : i32, i32, i32, i32
  }
}

</mosaic_0001>

<llo_original>
// kernel: tpu_custom_call.1
$region0: #{tpu_custom_call.1}
  #allocation0 [shape = 'u32[]', space=smem, size = 0x4, offset = 0x4, fixed_abs, tag = 'smem constant byte address 0x4 - core index']
  #allocation1 [shape = 'u32[144,128]{1,0:T(1,128)}', space=vmem, size = 0x12000, scoped, tag = 'internal scratch']
  %s0 = inlined_call_operand.vmem [shape: f32[1,2,32], index: 0, kind: input, shape index: {}]
  %s1 = inlined_call_operand.vmem [shape: f32[1,2,32,32], index: 1, kind: input, shape index: {}]
  %s2 = inlined_call_operand.vmem [shape: f32[32,16], index: 2, kind: input, shape index: {}]
  %s3 = inlined_call_operand.vmem [shape: f32[32,16], index: 3, kind: input, shape index: {}]
  %s4 = inlined_call_operand.vmem [shape: f32[1,2,16], index: 4, kind: input, shape index: {}]
  %s5 = inlined_call_operand.hbm [shape: f32[1,2,2,16], index: 5, kind: output, shape index: {}]
  %s6 = sld [smem:[#allocation0]]
  $region30: #{tpu_custom_call.1} parent=0
    _
  %s8 = ssub.s32 1, %s6
  %s9 = scalar_select 0, %s8, %s6
  $region1: #{tpu_custom_call.1} parent=0
    #allocation2 [shape = 'u8[2048]{0}', space=vmem, size = 0x800, scoped, tag = 'output window, operand 0, single buffered']
    #allocation3 [shape = 's32[1]{0}', space=sflag, size = 0x4, scoped, tag = 'scoped memory for tpu_custom_call.1']
    %10 = vsyncpa [#allocation3], 0
    // Predicated region
    $region2: #{tpu_custom_call.1} parent=1 // pred_check
      _
    $region3: #{tpu_custom_call.1} parent=1 // pred_check_branch
      %12 = sbr.rel (0) target = $region5
    $region4: #{tpu_custom_call.1} parent=1 // pred_region
      _
    $region5: #{tpu_custom_call.1} parent=1 // pred_fallthru
      _
    // Predicated region
    $region6: #{tpu_custom_call.1} parent=1 // pred_check
      _
    $region7: #{tpu_custom_call.1} parent=1 // pred_check_branch
      %14 = sbr.rel (0) target = $region9
    $region8: #{tpu_custom_call.1} parent=1 // pred_region
      _
    $region9: #{tpu_custom_call.1} parent=1 // pred_fallthru
      _
    // Predicated region
    $region10: #{tpu_custom_call.1} parent=1 // pred_check
      _
    $region11: #{tpu_custom_call.1} parent=1 // pred_check_branch
      %16 = sbr.rel (0) target = $region13
    $region12: #{tpu_custom_call.1} parent=1 // pred_region
      _
    $region13: #{tpu_custom_call.1} parent=1 // pred_fallthru
      _
    // Predicated region
    $region14: #{tpu_custom_call.1} parent=1 // pred_check
      _
    $region15: #{tpu_custom_call.1} parent=1 // pred_check_branch
      %18 = sbr.rel (0) target = $region17
    $region16: #{tpu_custom_call.1} parent=1 // pred_region
      _
    $region17: #{tpu_custom_call.1} parent=1 // pred_fallthru
      _
    // Predicated region
    $region18: #{tpu_custom_call.1} parent=1 // pred_check
      _
    $region19: #{tpu_custom_call.1} parent=1 // pred_check_branch
      %20 = sbr.rel (0) target = $region21
    $region20: #{tpu_custom_call.1} parent=1 // pred_region
      _
    $region21: #{tpu_custom_call.1} parent=1 // pred_fallthru
      _
    %v21 = vld [vmem:[%s0] sm:$0x3]
    %v22 = vld [vmem:[%s2] sm:$0xff]
    %v23 = vld [vmem:[%s2 + $0x8] sm:$0xff]
    %v24 = vld [vmem:[%s2 + $0x10] sm:$0xff]
    %v25 = vld [vmem:[%s2 + $0x18] sm:$0xff]
    %vm26 = vcmask 261120
    %v28 = vsel %vm26, %v21, 0
    %30 = vmatprep.subr.mxu0 0.0
    %31 = vmatpush1.msra.mxu0 0.0
    %32 = vmatprep.subr.mxu0 0.0
    %33 = vmatpush1.msra.mxu0 0.0
    %34 = vmatprep.subr.mxu0 0.0
    %35 = vmatpush1.msra.mxu0 0.0
    %36 = vmatprep.subr.mxu0 0.0
    %37 = vmatpush1.msra.mxu0 0.0
    %38 = vmatprep.subr.mxu0 0.0
    %39 = vmatpush1.msra.mxu0 0.0
    %40 = vmatprep.subr.mxu0 0.0
    %41 = vmatpush1.msra.mxu0 0.0
    %42 = vmatprep.subr.mxu0 0.0
    %43 = vmatpush1.msra.mxu0 0.0
    %44 = vmatprep.subr.mxu0 0.0
    %45 = vmatpush1.msra.mxu0 0.0
    %46 = vmatprep.subr.mxu0 0.0
    %47 = vmatpush1.msra.mxu0 0.0
    %48 = vmatprep.subr.mxu0 0.0
    %49 = vmatpush1.msra.mxu0 0.0
    %50 = vmatprep.subr.mxu0 0.0
    %51 = vmatpush1.msra.mxu0 0.0
    %52 = vmatprep.subr.mxu0 0.0
    %53 = vmatpush1.msra.mxu0 0.0
    %54 = vmatprep.subr.mxu0 0.0
    %55 = vmatpush1.msra.mxu0 %v25
    %56 = vmatprep.subr.mxu0 0.0
    %57 = vmatpush1.msra.mxu0 %v24
    %58 = vmatprep.subr.mxu0 0.0
    %59 = vmatpush1.msra.mxu0 %v23
    %60 = vmatprep.subr.mxu0 0.0
    %61 = vmatpush1.msra.mxu0 %v22
    %62 = vmatprep.subr.mxu0 0.0
    %63 = vmatpush2.msra.mxu0 0.0
    %64 = vmatprep.subr.mxu0 0.0
    %65 = vmatpush2.msra.mxu0 0.0
    %66 = vmatprep.subr.mxu0 0.0
    %67 = vmatpush2.msra.mxu0 0.0
    %68 = vmatprep.subr.mxu0 0.0
    %69 = vmatpush2.msra.mxu0 0.0
    %70 = vmatprep.subr.mxu0 0.0
    %71 = vmatpush2.msra.mxu0 0.0
    %72 = vmatprep.subr.mxu0 0.0
    %73 = vmatpush2.msra.mxu0 0.0
    %74 = vmatprep.subr.mxu0 0.0
    %75 = vmatpush2.msra.mxu0 0.0
    %76 = vmatprep.subr.mxu0 0.0
    %77 = vmatpush2.msra.mxu0 0.0
    %78 = vmatprep.subr.mxu0 0.0
    %79 = vmatpush2.msra.mxu0 0.0
    %80 = vmatprep.subr.mxu0 0.0
    %81 = vmatpush2.msra.mxu0 0.0
    %82 = vmatprep.subr.mxu0 0.0
    %83 = vmatpush2.msra.mxu0 0.0
    %84 = vmatprep.subr.mxu0 0.0
    %85 = vmatpush2.msra.mxu0 0.0
    %86 = vmatprep.subr.mxu0 0.0
    %87 = vmatpush2.msra.mxu0 0.0
    %88 = vmatprep.subr.mxu0 0.0
    %89 = vmatpush2.msra.mxu0 0.0
    %90 = vmatprep.subr.mxu0 0.0
    %91 = vmatpush2.msra.mxu0 0.0
    %92 = vmatprep.subr.mxu0 0.0
    %93 = vmatpush2.msra.mxu0 0.0
    %94 = vmatprep.mubr.f32.mxu0 0.0
    %95 = vmatmul.mubr.f32.gmra.mxu0 %v28
    %v96 = vpop.f32.mrf.mxu0
    %v97 = vadd.f32 0.0, %v96
    %v98 = vpop.f32.mrf.mxu0
    %99 = vdwg.mxu0
    %v100 = vld [vmem:[%s1] sm:$0xff]
    %v101 = vld [vmem:[%s1 + $0x8] sm:$0xff]
    %v102 = vld [vmem:[%s1 + $0x10] sm:$0xff]
    %v103 = vld [vmem:[%s1 + $0x18] sm:$0xff]
    %104 = vmatprep.subr.mxu0 0.0
    %105 = vmatpush1.msra.mxu0 0.0
    %106 = vmatprep.subr.mxu0 0.0
    %107 = vmatpush1.msra.mxu0 0.0
    %108 = vmatprep.subr.mxu0 0.0
    %109 = vmatpush1.msra.mxu0 0.0
    %110 = vmatprep.subr.mxu0 0.0
    %111 = vmatpush1.msra.mxu0 0.0
    %112 = vmatprep.subr.mxu0 0.0
    %113 = vmatpush1.msra.mxu0 0.0
    %114 = vmatprep.subr.mxu0 0.0
    %115 = vmatpush1.msra.mxu0 0.0
    %116 = vmatprep.subr.mxu0 0.0
    %117 = vmatpush1.msra.mxu0 0.0
    %118 = vmatprep.subr.mxu0 0.0
    %119 = vmatpush1.msra.mxu0 0.0
    %120 = vmatprep.subr.mxu0 0.0
    %121 = vmatpush1.msra.mxu0 0.0
    %122 = vmatprep.subr.mxu0 0.0
    %123 = vmatpush1.msra.mxu0 0.0
    %124 = vmatprep.subr.mxu0 0.0
    %125 = vmatpush1.msra.mxu0 0.0
    %126 = vmatprep.subr.mxu0 0.0
    %127 = vmatpush1.msra.mxu0 0.0
    %128 = vmatprep.subr.mxu0 0.0
    %129 = vmatpush1.msra.mxu0 %v103
    %130 = vmatprep.subr.mxu0 0.0
    %131 = vmatpush1.msra.mxu0 %v102
    %132 = vmatprep.subr.mxu0 0.0
    %133 = vmatpush1.msra.mxu0 %v101
    %134 = vmatprep.subr.mxu0 0.0
    %135 = vmatpush1.msra.mxu0 %v100
    %136 = vmatprep.subr.mxu0 0.0
    %137 = vmatpush2.msra.mxu0 0.0
    %138 = vmatprep.subr.mxu0 0.0
    %139 = vmatpush2.msra.mxu0 0.0
    %140 = vmatprep.subr.mxu0 0.0
    %141 = vmatpush2.msra.mxu0 0.0
    %142 = vmatprep.subr.mxu0 0.0
    %143 = vmatpush2.msra.mxu0 0.0
    %144 = vmatprep.subr.mxu0 0.0
    %145 = vmatpush2.msra.mxu0 0.0
    %146 = vmatprep.subr.mxu0 0.0
    %147 = vmatpush2.msra.mxu0 0.0
    %148 = vmatprep.subr.mxu0 0.0
    %149 = vmatpush2.msra.mxu0 0.0
    %150 = vmatprep.subr.mxu0 0.0
    %151 = vmatpush2.msra.mxu0 0.0
    %152 = vmatprep.subr.mxu0 0.0
    %153 = vmatpush2.msra.mxu0 0.0
    %154 = vmatprep.subr.mxu0 0.0
    %155 = vmatpush2.msra.mxu0 0.0
    %156 = vmatprep.subr.mxu0 0.0
    %157 = vmatpush2.msra.mxu0 0.0
    %158 = vmatprep.subr.mxu0 0.0
    %159 = vmatpush2.msra.mxu0 0.0
    %160 = vmatprep.subr.mxu0 0.0
    %161 = vmatpush2.msra.mxu0 0.0
    %162 = vmatprep.subr.mxu0 0.0
    %163 = vmatpush2.msra.mxu0 0.0
    %164 = vmatprep.subr.mxu0 0.0
    %165 = vmatpush2.msra.mxu0 0.0
    %166 = vmatprep.subr.mxu0 0.0
    %167 = vmatpush2.msra.mxu0 0.0
    %168 = vmatprep.mubr.f32.mxu0 0.0
    %169 = vmatmul.mubr.f32.gmra.mxu0 %v28
    %v170 = vpop.f32.mrf.mxu0
    %v171 = vadd.f32 0.0, %v170
    %v172 = vpop.f32.mrf.mxu0
    %173 = vdwg.mxu0
    %vm174 = vcmp.gt.f32.partialorder %v171, 0.0
    %v175 = vmul.f32 %v171, 0.2
    %v176 = vsel %vm174, %v171, %v175
    %v177 = vld [vmem:[%s3] sm:$0xff]
    %v178 = vld [vmem:[%s3 + $0x8] sm:$0xff]
    %v179 = vld [vmem:[%s3 + $0x10] sm:$0xff]
    %v180 = vld [vmem:[%s3 + $0x18] sm:$0xff]
    %v182 = vsel %vm26, %v176, 0
    %184 = vmatprep.subr.mxu0 0.0
    %185 = vmatpush1.msra.mxu0 0.0
    %186 = vmatprep.subr.mxu0 0.0
    %187 = vmatpush1.msra.mxu0 0.0
    %188 = vmatprep.subr.mxu0 0.0
    %189 = vmatpush1.msra.mxu0 0.0
    %190 = vmatprep.subr.mxu0 0.0
    %191 = vmatpush1.msra.mxu0 0.0
    %192 = vmatprep.subr.mxu0 0.0
    %193 = vmatpush1.msra.mxu0 0.0
    %194 = vmatprep.subr.mxu0 0.0
    %195 = vmatpush1.msra.mxu0 0.0
    %196 = vmatprep.subr.mxu0 0.0
    %197 = vmatpush1.msra.mxu0 0.0
    %198 = vmatprep.subr.mxu0 0.0
    %199 = vmatpush1.msra.mxu0 0.0
    %200 = vmatprep.subr.mxu0 0.0
    %201 = vmatpush1.msra.mxu0 0.0
    %202 = vmatprep.subr.mxu0 0.0
    %203 = vmatpush1.msra.mxu0 0.0
    %204 = vmatprep.subr.mxu0 0.0
    %205 = vmatpush1.msra.mxu0 0.0
    %206 = vmatprep.subr.mxu0 0.0
    %207 = vmatpush1.msra.mxu0 0.0
    %208 = vmatprep.subr.mxu0 0.0
    %209 = vmatpush1.msra.mxu0 %v180
    %210 = vmatprep.subr.mxu0 0.0
    %211 = vmatpush1.msra.mxu0 %v179
    %212 = vmatprep.subr.mxu0 0.0
    %213 = vmatpush1.msra.mxu0 %v178
    %214 = vmatprep.subr.mxu0 0.0
    %215 = vmatpush1.msra.mxu0 %v177
    %216 = vmatprep.subr.mxu0 0.0
    %217 = vmatpush2.msra.mxu0 0.0
    %218 = vmatprep.subr.mxu0 0.0
    %219 = vmatpush2.msra.mxu0 0.0
    %220 = vmatprep.subr.mxu0 0.0
    %221 = vmatpush2.msra.mxu0 0.0
    %222 = vmatprep.subr.mxu0 0.0
    %223 = vmatpush2.msra.mxu0 0.0
    %224 = vmatprep.subr.mxu0 0.0
    %225 = vmatpush2.msra.mxu0 0.0
    %226 = vmatprep.subr.mxu0 0.0
    %227 = vmatpush2.msra.mxu0 0.0
    %228 = vmatprep.subr.mxu0 0.0
    %229 = vmatpush2.msra.mxu0 0.0
    %230 = vmatprep.subr.mxu0 0.0
    %231 = vmatpush2.msra.mxu0 0.0
    %232 = vmatprep.subr.mxu0 0.0
    %233 = vmatpush2.msra.mxu0 0.0
    %234 = vmatprep.subr.mxu0 0.0
    %235 = vmatpush2.msra.mxu0 0.0
    %236 = vmatprep.subr.mxu0 0.0
    %237 = vmatpush2.msra.mxu0 0.0
    %238 = vmatprep.subr.mxu0 0.0
    %239 = vmatpush2.msra.mxu0 0.0
    %240 = vmatprep.subr.mxu0 0.0
    %241 = vmatpush2.msra.mxu0 0.0
    %242 = vmatprep.subr.mxu0 0.0
    %243 = vmatpush2.msra.mxu0 0.0
    %244 = vmatprep.subr.mxu0 0.0
    %245 = vmatpush2.msra.mxu0 0.0
    %246 = vmatprep.subr.mxu0 0.0
    %247 = vmatpush2.msra.mxu0 0.0
    %248 = vmatprep.mubr.f32.mxu0 0.0
    %249 = vmatmul.mubr.f32.gmra.mxu0 %v182
    %v250 = vpop.f32.mrf.mxu0
    %v251 = vadd.f32 %v97, %v250
    %v252 = vpop.f32.mrf.mxu0
    %253 = vdwg.mxu0
    %v254 = vld [vmem:[%s4] sm:$0x1]
    %v255 = vlaneseq
    %v256 = vshrl.u32 %v255, 7
    %v257 = vsub.s32 0, %v256
    %v258 = vrot.slane %v254, %v257
    %v259 = vadd.f32 %v251, %v258
    %vm260 = vcmp.gt.f32.partialorder %v259, 0.0
    %v261 = vmul.f32 %v259, 0.2
    %v262 = vsel %vm260, %v259, %v261
    %vm263 = vcmask 123904
    %264 = vst.msk [vmem:[#allocation2] sm:$0x3] %vm263, %v262
    %s265 = scalar_lea.vmem %s1, 32
    %v266 = vld [vmem:[%s265] sm:$0xff]
    %v267 = vld [vmem:[%s265 + $0x8] sm:$0xff]
    %v268 = vld [vmem:[%s265 + $0x10] sm:$0xff]
    %v269 = vld [vmem:[%s265 + $0x18] sm:$0xff]
    %270 = vmatprep.subr.mxu0 0.0
    %271 = vmatpush1.msra.mxu0 0.0
    %272 = vmatprep.subr.mxu0 0.0
    %273 = vmatpush1.msra.mxu0 0.0
    %274 = vmatprep.subr.mxu0 0.0
    %275 = vmatpush1.msra.mxu0 0.0
    %276 = vmatprep.subr.mxu0 0.0
    %277 = vmatpush1.msra.mxu0 0.0
    %278 = vmatprep.subr.mxu0 0.0
    %279 = vmatpush1.msra.mxu0 0.0
    %280 = vmatprep.subr.mxu0 0.0
    %281 = vmatpush1.msra.mxu0 0.0
    %282 = vmatprep.subr.mxu0 0.0
    %283 = vmatpush1.msra.mxu0 0.0
    %284 = vmatprep.subr.mxu0 0.0
    %285 = vmatpush1.msra.mxu0 0.0
    %286 = vmatprep.subr.mxu0 0.0
    %287 = vmatpush1.msra.mxu0 0.0
    %288 = vmatprep.subr.mxu0 0.0
    %289 = vmatpush1.msra.mxu0 0.0
    %290 = vmatprep.subr.mxu0 0.0
    %291 = vmatpush1.msra.mxu0 0.0
    %292 = vmatprep.subr.mxu0 0.0
    %293 = vmatpush1.msra.mxu0 0.0
    %294 = vmatprep.subr.mxu0 0.0
    %295 = vmatpush1.msra.mxu0 %v269
    %296 = vmatprep.subr.mxu0 0.0
    %297 = vmatpush1.msra.mxu0 %v268
    %298 = vmatprep.subr.mxu0 0.0
    %299 = vmatpush1.msra.mxu0 %v267
    %300 = vmatprep.subr.mxu0 0.0
    %301 = vmatpush1.msra.mxu0 %v266
    %302 = vmatprep.subr.mxu0 0.0
    %303 = vmatpush2.msra.mxu0 0.0
    %304 = vmatprep.subr.mxu0 0.0
    %305 = vmatpush2.msra.mxu0 0.0
    %306 = vmatprep.subr.mxu0 0.0
    %307 = vmatpush2.msra.mxu0 0.0
    %308 = vmatprep.subr.mxu0 0.0
    %309 = vmatpush2.msra.mxu0 0.0
    %310 = vmatprep.subr.mxu0 0.0
    %311 = vmatpush2.msra.mxu0 0.0
    %312 = vmatprep.subr.mxu0 0.0
    %313 = vmatpush2.msra.mxu0 0.0
    %314 = vmatprep.subr.mxu0 0.0
    %315 = vmatpush2.msra.mxu0 0.0
    %316 = vmatprep.subr.mxu0 0.0
    %317 = vmatpush2.msra.mxu0 0.0
    %318 = vmatprep.subr.mxu0 0.0
    %319 = vmatpush2.msra.mxu0 0.0
    %320 = vmatprep.subr.mxu0 0.0
    %321 = vmatpush2.msra.mxu0 0.0
    %322 = vmatprep.subr.mxu0 0.0
    %323 = vmatpush2.msra.mxu0 0.0
    %324 = vmatprep.subr.mxu0 0.0
    %325 = vmatpush2.msra.mxu0 0.0
    %326 = vmatprep.subr.mxu0 0.0
    %327 = vmatpush2.msra.mxu0 0.0
    %328 = vmatprep.subr.mxu0 0.0
    %329 = vmatpush2.msra.mxu0 0.0
    %330 = vmatprep.subr.mxu0 0.0
    %331 = vmatpush2.msra.mxu0 0.0
    %332 = vmatprep.subr.mxu0 0.0
    %333 = vmatpush2.msra.mxu0 0.0
    %334 = vmatprep.mubr.f32.mxu0 0.0
    %335 = vmatmul.mubr.f32.gmra.mxu0 %v28
    %v336 = vpop.f32.mrf.mxu0
    %v337 = vadd.f32 0.0, %v336
    %v338 = vpop.f32.mrf.mxu0
    %339 = vdwg.mxu0
    %vm340 = vcmp.gt.f32.partialorder %v337, 0.0
    %v341 = vmul.f32 %v337, 0.2
    %v342 = vsel %vm340, %v337, %v341
    %v343 = vld [vmem:[%s3] sm:$0xff]
    %v344 = vld [vmem:[%s3 + $0x8] sm:$0xff]
    %v345 = vld [vmem:[%s3 + $0x10] sm:$0xff]
    %v346 = vld [vmem:[%s3 + $0x18] sm:$0xff]
    %v348 = vsel %vm26, %v342, 0
    %350 = vmatprep.subr.mxu0 0.0
    %351 = vmatpush1.msra.mxu0 0.0
    %352 = vmatprep.subr.mxu0 0.0
    %353 = vmatpush1.msra.mxu0 0.0
    %354 = vmatprep.subr.mxu0 0.0
    %355 = vmatpush1.msra.mxu0 0.0
    %356 = vmatprep.subr.mxu0 0.0
    %357 = vmatpush1.msra.mxu0 0.0
    %358 = vmatprep.subr.mxu0 0.0
    %359 = vmatpush1.msra.mxu0 0.0
    %360 = vmatprep.subr.mxu0 0.0
    %361 = vmatpush1.msra.mxu0 0.0
    %362 = vmatprep.subr.mxu0 0.0
    %363 = vmatpush1.msra.mxu0 0.0
    %364 = vmatprep.subr.mxu0 0.0
    %365 = vmatpush1.msra.mxu0 0.0
    %366 = vmatprep.subr.mxu0 0.0
    %367 = vmatpush1.msra.mxu0 0.0
    %368 = vmatprep.subr.mxu0 0.0
    %369 = vmatpush1.msra.mxu0 0.0
    %370 = vmatprep.subr.mxu0 0.0
    %371 = vmatpush1.msra.mxu0 0.0
    %372 = vmatprep.subr.mxu0 0.0
    %373 = vmatpush1.msra.mxu0 0.0
    %374 = vmatprep.subr.mxu0 0.0
    %375 = vmatpush1.msra.mxu0 %v346
    %376 = vmatprep.subr.mxu0 0.0
    %377 = vmatpush1.msra.mxu0 %v345
    %378 = vmatprep.subr.mxu0 0.0
    %379 = vmatpush1.msra.mxu0 %v344
    %380 = vmatprep.subr.mxu0 0.0
    %381 = vmatpush1.msra.mxu0 %v343
    %382 = vmatprep.subr.mxu0 0.0
    %383 = vmatpush2.msra.mxu0 0.0
    %384 = vmatprep.subr.mxu0 0.0
    %385 = vmatpush2.msra.mxu0 0.0
    %386 = vmatprep.subr.mxu0 0.0
    %387 = vmatpush2.msra.mxu0 0.0
    %388 = vmatprep.subr.mxu0 0.0
    %389 = vmatpush2.msra.mxu0 0.0
    %390 = vmatprep.subr.mxu0 0.0
    %391 = vmatpush2.msra.mxu0 0.0
    %392 = vmatprep.subr.mxu0 0.0
    %393 = vmatpush2.msra.mxu0 0.0
    %394 = vmatprep.subr.mxu0 0.0
    %395 = vmatpush2.msra.mxu0 0.0
    %396 = vmatprep.subr.mxu0 0.0
    %397 = vmatpush2.msra.mxu0 0.0
    %398 = vmatprep.subr.mxu0 0.0
    %399 = vmatpush2.msra.mxu0 0.0
    %400 = vmatprep.subr.mxu0 0.0
    %401 = vmatpush2.msra.mxu0 0.0
    %402 = vmatprep.subr.mxu0 0.0
    %403 = vmatpush2.msra.mxu0 0.0
    %404 = vmatprep.subr.mxu0 0.0
    %405 = vmatpush2.msra.mxu0 0.0
    %406 = vmatprep.subr.mxu0 0.0
    %407 = vmatpush2.msra.mxu0 0.0
    %408 = vmatprep.subr.mxu0 0.0
    %409 = vmatpush2.msra.mxu0 0.0
    %410 = vmatprep.subr.mxu0 0.0
    %411 = vmatpush2.msra.mxu0 0.0
    %412 = vmatprep.subr.mxu0 0.0
    %413 = vmatpush2.msra.mxu0 0.0
    %414 = vmatprep.mubr.f32.mxu0 0.0
    %415 = vmatmul.mubr.f32.gmra.mxu0 %v348
    %v416 = vpop.f32.mrf.mxu0
    %v417 = vadd.f32 %v97, %v416
    %v418 = vpop.f32.mrf.mxu0
    %419 = vdwg.mxu0
    %v420 = vld [vmem:[%s4 + $0x1] sm:$0x1]
    %v421 = vlaneseq
    %v422 = vshrl.u32 %v421, 7
    %v423 = vsub.s32 0, %v422
    %v424 = vrot.slane %v420, %v423
    %v425 = vadd.f32 %v417, %v424
    %vm426 = vcmp.gt.f32.partialorder %v425, 0.0
    %v427 = vmul.f32 %v425, 0.2
    %v428 = vsel %vm426, %v425, %v427
    %s429 = scalar_lea.vmem [#allocation2], 2
    %430 = vst.msk [vmem:[%s429] sm:$0x3] %vm263, %v428
    // Predicated region
    $region22: #{tpu_custom_call.1} parent=1 // pred_check
      _
    $region23: #{tpu_custom_call.1} parent=1 // pred_check_branch
      %432 = sbr.rel (0) target = $region25
    $region24: #{tpu_custom_call.1} parent=1 // pred_region
      %s434 = ssub.s32 64, 64
      %435 = vsyncadd [#allocation3], %s434
      %s436 = sshll.u32 [#allocation2], 4
      %s437 = int_to_ptr.vmem [resolvable:$true] %s436
      %442 = dma.vmem_to_hbm [thread:$0]  %s437, 64, %s5, [#allocation3], 32, 32, 2
    $region25: #{tpu_custom_call.1} parent=1 // pred_fallthru
      _
    // Predicated region
    $region26: #{tpu_custom_call.1} parent=1 // pred_check
      _
    $region27: #{tpu_custom_call.1} parent=1 // pred_check_branch
      %444 = sbr.rel (0) target = $region29
    $region28: #{tpu_custom_call.1} parent=1 // pred_region
      %445 = dma.done [#allocation3], 64
    $region29: #{tpu_custom_call.1} parent=1 // pred_fallthru
      _
    %446 = vsyncpa [#allocation3], 1

</llo_original>
